<compile_context>
chip_gen: v7x
topology: tpu7x:2x2x1
jax: 0.10.0
libtpu: 0.0.40
codegen_flags: <defaults>
</compile_context>

<pallas_src>
import math
import functools

import jax
import jax.numpy as jnp
from jax import lax
from jax.experimental import pallas as pl
from jax.experimental.pallas import tpu as pltpu


# --------------------------------------------------------------------------
# Kernel
# --------------------------------------------------------------------------
def _sinusoidal_pe_kernel(freq_ref, phase_ref, out_ref, *, scale: float):
    """One seq tile of the PE table.

    freq_ref, phase_ref: (1, width) f32, identical for every grid step
                         (constant index_map -> DMA'd once / kept resident).
    out_ref:             (tile_s, width) output tile.
    """
    seq_tile = out_ref.shape[0]
    row0 = pl.program_id(0) * seq_tile  # element offset of this tile

    # (seq_tile, 1) position column (float32).
    pos = (lax.broadcasted_iota(jnp.int32, (seq_tile, 1), 0) + row0).astype(
        jnp.float32)

    # angle[p, j] = p * freq[j] + phase[j];  cos(x) = sin(x + pi/2)
    angle = pos * freq_ref[...] + phase_ref[...]     # (seq_tile, width)
    pe = jnp.sin(angle)                              # single transcendental/elem

    if scale != 1.0:
        # Exact L2 normalization: row norm is sqrt(width/2) by construction,
        # so the reduce/sqrt/divide collapses to one constant multiply.
        pe = pe * scale

    out_ref[...] = pe.astype(out_ref.dtype)


# --------------------------------------------------------------------------
# Tile selection
# --------------------------------------------------------------------------
def _choose_tile(seq_len: int, width: int, tile_s: int, itemsize: int) -> int:
    if seq_len <= 8:
        # Single full-extent block (legal for any seq_len, nothing to split).
        return seq_len

    # VMEM clamp: keep the 2 double-buffered output tiles under ~16 MiB total
    # so the writeback stays pipelined even on v7x (64 MiB physical VMEM).
    max_rows = (16 * 1024 * 1024) // (2 * width * itemsize)
    max_rows = max(8, (max_rows // 8) * 8)

    ts = max(8, (min(tile_s, max_rows) // 8) * 8)

    # Always produce >= 2 grid steps so ("parallel",) can shard the seq axis
    # across v7x's two TensorCores (no effect on single-TC v5e/v6e).
    half = ((((seq_len + 1) // 2) + 7) // 8) * 8
    ts = min(ts, half)
    return ts


# --------------------------------------------------------------------------
# Table builder (memoized: output depends only on static params, not on x)
# --------------------------------------------------------------------------
@functools.lru_cache(maxsize=None)
def _pe_table(seq_len: int, width: int, normalize: bool, tile_s: int,
              dtype_name: str):
    out_dtype = jnp.dtype(dtype_name)
    assert width % 2 == 0, "width must be even (as in the torch module)"
    # NOTE: width that is a multiple of 128 keeps the output store lane-dense
    # (real transformer widths are fine); tiny widths still work, just slower.

    ts = _choose_tile(seq_len, width, tile_s, out_dtype.itemsize)
    grid = (pl.cdiv(seq_len, ts),)

    # Hoisted column metadata: interleaved frequencies + pi/2 phase on odd
    # (cos) columns. Built once here, resident across all grid steps.
    freq_half = jnp.exp(jnp.arange(0, width, 2, dtype=jnp.float32)
                        * (-math.log(10000.0) / float(width)))   # (width//2,)
    freq = jnp.repeat(freq_half, 2).reshape(1, width)            # (1, width)
    phase = jnp.tile(jnp.array([0.0, math.pi / 2.0], jnp.float32),
                     width // 2).reshape(1, width)               # (1, width)

    scale = math.sqrt(2.0 / float(width)) if normalize else 1.0
    kernel = functools.partial(_sinusoidal_pe_kernel, scale=scale)

    return pl.pallas_call(
        kernel,
        out_shape=jax.ShapeDtypeStruct((seq_len, width), out_dtype),
        grid=grid,
        in_specs=[pl.BlockSpec((1, width), lambda i: (0, 0)),
                  pl.BlockSpec((1, width), lambda i: (0, 0))],
        out_specs=pl.BlockSpec((ts, width), lambda i: (i, 0)),
        compiler_params=pltpu.CompilerParams(
            dimension_semantics=("parallel",),
            vmem_limit_bytes=32 * 1024 * 1024),
    )(freq, phase)


# --------------------------------------------------------------------------
# Forward wrapper (mirrors SinusoidalPositionalEmbedding.forward)
# --------------------------------------------------------------------------
def sinusoidal_positional_embedding(x, *, width: int, max_len: int,
                                    normalize: bool = True,
                                    tile_s: int = 1024,
                                    out_dtype=jnp.float32):
    """Pallas equivalent of SinusoidalPositionalEmbedding.forward.

    x: (batch_size, seq_len) token ids (values unused; only seq_len matters).
    returns: (seq_len, width) positional embeddings (f32 by default; bf16 is
             an opt-in store-roofline mode).

    Note: call this at trace-free (eager) time or hoist it out of jit — the
    result is shape-only and memoized, matching the torch module's __init__.
    """
    _, seq_len = x.shape
    assert seq_len <= max_len, "seq_len must not exceed max_len"
    return _pe_table(int(seq_len), int(width), bool(normalize), int(tile_s),
                     jnp.dtype(out_dtype).name)


# --------------------------------------------------------------------------
# Pure-JAX reference (mirrors the PyTorch __init__/forward)
# --------------------------------------------------------------------------
def _reference(seq_len: int, width: int, max_len: int, normalize: bool = True):
    position = jnp.arange(max_len, dtype=jnp.float32)[:, None]
    div_term = jnp.exp(jnp.arange(0, width, 2, dtype=jnp.float32)
                       * (-math.log(10000.0) / width))
    pe = jnp.zeros((max_len, width), dtype=jnp.float32)
    pe = pe.at[:, 0::2].set(jnp.sin(position * div_term))
    pe = pe.at[:, 1::2].set(jnp.cos(position * div_term))
    if normalize:
        l2 = jnp.linalg.norm(pe, axis=-1, keepdims=True)
        pe = pe / l2
    return pe[:seq_len, :]


if __name__ == "__main__":
    key = jax.random.PRNGKey(0)

    # Test 1: small, module-typical shapes (batch=2, seq=8, width=32).
    batch, seq_len, width, max_len = 2, 8, 32, 16
    x = jax.random.randint(key, (batch, seq_len), 0, 100, dtype=jnp.int32)
    out = jax.block_until_ready(
        sinusoidal_positional_embedding(x, width=width, max_len=max_len))
    ref = _reference(seq_len, width, max_len, normalize=True)
    assert out.shape == (seq_len, width)
    assert out.dtype == jnp.float32
    assert jnp.allclose(out, ref, atol=1e-5, rtol=1e-5), "mismatch (test 1)"

    # Test 2: lane-dense width (128) + automatic >=2-tile split (v7x megacore).
    seq_len2, width2, max_len2 = 48, 128, 64
    x2 = jax.random.randint(key, (batch, seq_len2), 0, 100, dtype=jnp.int32)
    out2 = jax.block_until_ready(
        sinusoidal_positional_embedding(x2, width=width2, max_len=max_len2))
    ref2 = _reference(seq_len2, width2, max_len2, normalize=True)
    assert out2.shape == (seq_len2, width2)
    assert jnp.allclose(out2, ref2, atol=1e-5, rtol=1e-5), "mismatch (test 2)"

    # Test 3: caller-chosen small tiles (grid of 3) + normalize=False path.
    seq_len3, max_len3 = 24, 32
    x3 = jax.random.randint(key, (batch, seq_len3), 0, 100, dtype=jnp.int32)
    out3 = jax.block_until_ready(
        sinusoidal_positional_embedding(x3, width=width, max_len=max_len3,
                                        normalize=False, tile_s=8))
    ref3 = _reference(seq_len3, width, max_len3, normalize=False)
    assert jnp.allclose(out3, ref3, atol=1e-5, rtol=1e-5), "mismatch (test 3)"

    # Test 4: opt-in bf16 output mode (halves writeback bytes on v5e/v6e).
    out4 = jax.block_until_ready(
        sinusoidal_positional_embedding(x2, width=width2, max_len=max_len2,
                                        out_dtype=jnp.bfloat16))
    assert out4.dtype == jnp.bfloat16
    assert jnp.allclose(out4.astype(jnp.float32), ref2, atol=2e-2, rtol=2e-2), \
        "mismatch (test 4, bf16)"

    print("KERNEL_OK")
</pallas_src>

<mosaic_0001>
module attributes {stable_mosaic.version = 11 : i64} {
  func.func @_sinusoidal_pe_kernel(%arg0: i32, %arg1: memref<1x32xf32, #tpu.memory_space<vmem>>, %arg2: memref<1x32xf32, #tpu.memory_space<vmem>>, %arg3: memref<8x32xf32, #tpu.memory_space<vmem>>) attributes {dimension_semantics = [#tpu.dimension_semantics<parallel>], iteration_bounds = array<i64: 1>, scalar_prefetch = 0 : i64, scratch_operands = 0 : i64, tpu.core_type = #tpu.core_type<tc>, window_params = [{pipeline_mode = #tpu.pipeline_mode<synchronous>, transform_indices = @transform_0, window_bounds = array<i64: 1, 32>}, {pipeline_mode = #tpu.pipeline_mode<synchronous>, transform_indices = @transform_1, window_bounds = array<i64: 1, 32>}, {transform_indices = @transform_2, window_bounds = array<i64: 8, 32>}]} {
    %c8_i32 = arith.constant 8 : i32
    %0 = arith.muli %arg0, %c8_i32 : i32
    %1 = tpu.iota {dimensions = array<i32: 0>} : vector<8x1xi32>
    %2 = vector.broadcast %0 : i32 to vector<8x1xi32>
    %3 = arith.addi %1, %2 : vector<8x1xi32>
    %4 = arith.sitofp %3 : vector<8x1xi32> to vector<8x1xf32>
    %c0 = arith.constant 0 : index
    %c0_0 = arith.constant 0 : index
    %5 = vector.load %arg1[%c0, %c0_0] : memref<1x32xf32, #tpu.memory_space<vmem>>, vector<1x32xf32>
    %6 = vector.broadcast %4 : vector<8x1xf32> to vector<8x32xf32>
    %7 = vector.broadcast %5 : vector<1x32xf32> to vector<8x32xf32>
    %8 = arith.mulf %6, %7 : vector<8x32xf32>
    %c0_1 = arith.constant 0 : index
    %c0_2 = arith.constant 0 : index
    %9 = vector.load %arg2[%c0_1, %c0_2] : memref<1x32xf32, #tpu.memory_space<vmem>>, vector<1x32xf32>
    %10 = vector.broadcast %9 : vector<1x32xf32> to vector<8x32xf32>
    %11 = arith.addf %8, %10 : vector<8x32xf32>
    %12 = math.sin %11 : vector<8x32xf32>
    %cst = arith.constant 2.500000e-01 : f32
    %13 = vector.broadcast %cst : f32 to vector<8x32xf32>
    %14 = arith.mulf %12, %13 : vector<8x32xf32>
    %c0_3 = arith.constant 0 : index
    %c0_4 = arith.constant 0 : index
    %15 = vector.load %arg3[%c0_3, %c0_4] : memref<8x32xf32, #tpu.memory_space<vmem>>, vector<8x32xf32>
    tpu.vector_store %arg3[%c0_3, %c0_4], %14 {strides = array<i32>} : memref<8x32xf32, #tpu.memory_space<vmem>>, vector<8x32xf32>,
    return
  }
  func.func @transform_0(%arg0: i32) -> (i32, i32) {
    %c0_i32 = arith.constant 0 : i32
    %c0_i32_0 = arith.constant 0 : i32
    %c0_i32_1 = arith.constant 0 : i32
    return %c0_i32, %c0_i32_0 : i32, i32
  }
  func.func @transform_1(%arg0: i32) -> (i32, i32) {
    %c0_i32 = arith.constant 0 : i32
    %c0_i32_0 = arith.constant 0 : i32
    %c0_i32_1 = arith.constant 0 : i32
    return %c0_i32, %c0_i32_0 : i32, i32
  }
  func.func @transform_2(%arg0: i32) -> (i32, i32) {
    %c0_i32 = arith.constant 0 : i32
    %c0_i32_0 = arith.constant 0 : i32
    return %arg0, %c0_i32 : i32, i32
  }
}

</mosaic_0001>

<llo_original>
// kernel: tpu_custom_call.1
$region0: #{tpu_custom_call.1}
  #allocation0 [shape = 'u32[]', space=smem, size = 0x4, offset = 0x4, fixed_abs, tag = 'smem constant byte address 0x4 - core index']
  #allocation1 [shape = 'u32[144,128]{1,0:T(1,128)}', space=vmem, size = 0x12000, scoped, tag = 'internal scratch']
  %s0 = inlined_call_operand.hbm [shape: f32[1,32], index: 0, kind: input, shape index: {}]
  %s1 = inlined_call_operand.vmem [shape: f32[1,32], index: 1, kind: input, shape index: {}]
  %s2 = inlined_call_operand.hbm [shape: f32[8,32], index: 2, kind: output, shape index: {}]
  %s3 = sld [smem:[#allocation0]]
  $region22: #{tpu_custom_call.1} parent=0
    _
  %s5 = ssub.s32 1, %s3
  %s6 = scalar_select 0, %s5, %s3
  $region1: #{tpu_custom_call.1} parent=0
    #allocation2 [shape = 'u8[512]{0}', space=vmem, size = 0x400, scoped, tag = 'input window, operand 0, single buffered']
    #allocation3 [shape = 's32[1]{0}', space=sflag, size = 0x4, scoped, tag = 'scoped memory for tpu_custom_call.1']
    #allocation4 [shape = 's32[1]{0}', space=sflag, size = 0x4, scoped, tag = 'scoped memory for tpu_custom_call.1']
    #allocation5 [shape = 'u8[4096]{0}', space=vmem, size = 0x1000, scoped, tag = 'output window, operand 0, single buffered']
    %7 = vsyncpa [#allocation3], 0
    %8 = vsyncpa [#allocation4], 0
    // Predicated region
    $region2: #{tpu_custom_call.1} parent=1 // pred_check
      _
    $region3: #{tpu_custom_call.1} parent=1 // pred_check_branch
      %10 = sbr.rel (0) target = $region5
    $region4: #{tpu_custom_call.1} parent=1 // pred_region
      %s12 = ssub.s32 16, 16
      %13 = vsyncadd [#allocation3], %s12
      %s15 = sshll.u32 [#allocation2], 4
      %s16 = int_to_ptr.vmem [resolvable:$true] %s15
      %18 = dma.hbm_to_vmem [thread:$0]  %s0, 16, %s16, [#allocation3]
    $region5: #{tpu_custom_call.1} parent=1 // pred_fallthru
      _
    // Predicated region
    $region6: #{tpu_custom_call.1} parent=1 // pred_check
      _
    $region7: #{tpu_custom_call.1} parent=1 // pred_check_branch
      %20 = sbr.rel (0) target = $region9
    $region8: #{tpu_custom_call.1} parent=1 // pred_region
      _
    $region9: #{tpu_custom_call.1} parent=1 // pred_fallthru
      _
    // Predicated region
    $region10: #{tpu_custom_call.1} parent=1 // pred_check
      _
    $region11: #{tpu_custom_call.1} parent=1 // pred_check_branch
      %22 = sbr.rel (0) target = $region13
    $region12: #{tpu_custom_call.1} parent=1 // pred_region
      %23 = dma.done [#allocation3], 16
    $region13: #{tpu_custom_call.1} parent=1 // pred_fallthru
      _
    %s24 = smul.u32 0, 8
    %v25 = vlaneseq
    %v26 = vshrl.u32 %v25, 7
    %v27 = vstv %s24
    %v28 = vadd.s32 %v26, %v27
    %v29 = vcvt.s32.f32 %v28
    %v30 = vld [vmem:[#allocation2] sm:$0x1]
    %v32 = vlaneseq
    %v33 = vshrl.u32 %v32, 7
    %v34 = vsub.s32 0, %v33
    %v35 = vrot.slane %v30, %v34
    %v37 = vmul.f32 %v29, %v35
    %v38 = vld [vmem:[%s1] sm:$0x1]
    %v40 = vlaneseq
    %v41 = vshrl.u32 %v40, 7
    %v42 = vsub.s32 0, %v41
    %v43 = vrot.slane %v38, %v42
    %v45 = vadd.f32 %v37, %v43
    %v46 = vand.u32 2147483647, %v45
    %vm47 = vcmp.le.f32.partialorder %v46, 0.7853982
    %vm48 = vcmp.lt.s32.totalorder %v45, 0
    %v49 = vand.u32 %v45, 2139095040
    %v50 = vshrl.u32 %v49, 23
    %v51 = vsub.s32 %v50, 127
    %v52 = vand.u32 2147483647, %v45
    %v53 = vand.u32 %v52, 8388607
    %v54 = vor.u32 %v53, 8388608
    %v55 = vsub.s32 0, %v54
    %v56 = vadd.s32 %v51, 1
    %vm57 = vcmp.gt.s32.totalorder %v56, 0
    %v58 = vsel %vm57, %v56, 0
    %v59 = vshrl.u32 %v58, 5
    %v60 = vand.u32 %v58, 31
    %v61 = vsub.s32 32, %v60
    %v62 = vshrl.u32 683565275, %v61
    %v63 = vshll.u32 683565275, %v60
    %v64 = vshrl.u32 2475754826, %v61
    %v65 = vor.u32 %v63, %v64
    %v66 = vshll.u32 2475754826, %v60
    %v67 = vshrl.u32 2131351028, %v61
    %v68 = vor.u32 %v66, %v67
    %v69 = vshll.u32 2131351028, %v60
    %v70 = vshrl.u32 2102212464, %v61
    %v71 = vor.u32 %v69, %v70
    %v72 = vshll.u32 2102212464, %v60
    %v73 = vshrl.u32 920167782, %v61
    %v74 = vor.u32 %v72, %v73
    %v75 = vshll.u32 920167782, %v60
    %v76 = vshrl.u32 1326507024, %v61
    %v77 = vor.u32 %v75, %v76
    %vm78 = vcmp.lt.s32.totalorder %v59, 1
    %vm79 = vcmp.lt.s32.totalorder %v59, 2
    %vm80 = vcmp.lt.s32.totalorder %v59, 3
    %vm81 = vcmp.lt.s32.totalorder %v59, 4
    %v82 = vsel %vm78, %v62, %v65
    %v83 = vsel %vm81, %v71, 2102212464
    %v84 = vsel %vm80, %v68, %v83
    %v85 = vsel %vm79, %v82, %v84
    %v86 = vsel %vm78, %v65, %v68
    %v87 = vsel %vm81, %v74, 920167782
    %v88 = vsel %vm80, %v71, %v87
    %v89 = vsel %vm79, %v86, %v88
    %v90 = vsel %vm78, %v68, %v71
    %v91 = vsel %vm81, %v77, 1326507024
    %v92 = vsel %vm80, %v74, %v91
    %v93 = vsel %vm79, %v90, %v92
    %v94 = vshll.u32 %v54, 8
    %v95 = vmul.u32.u64.compose %v94, %v93
    %v96 = vextract.low.u32 %v95
    %v97 = vextract.high.u32 %v95
    %v98 = vmul.u32.u64.compose %v94, %v89
    %v99 = vextract.low.u32 %v98
    %v100 = vextract.high.u32 %v98
    %v101 = vmul.u32 %v94, %v85
    %v102 = vadd.s32 %v97, %v99
    %vm103 = vc.u32 %v97, %v99
    %v104 = vadd.s32 %v100, 1
    %v105 = vsel %vm103, %v104, %v100
    %v106 = vadd.s32 %v101, %v105
    %v107 = vadd.s32 %v106, 536870912
    %v108 = vshrl.u32 %v107, 30
    %v109 = vshll.u32 %v108, 30
    %v110 = vsub.s32 %v106, %v109
    %vm111 = vcmp.lt.s32.totalorder %v110, 0
    %v112 = vsub.s32 0, %v110
    %v113 = vsel %vm111, %v112, %v110
    %v114 = vclz %v113
    %v115 = vsub.s32 %v114, 2
    %vm116 = vcmp.gt.s32.totalorder 0, %v115
    %v117 = vsel %vm116, 0, %v115
    %v118 = vsub.s32 32, %v117
    %v119 = vshll.u32 %v110, %v117
    %v120 = vshrl.u32 %v102, %v118
    %v121 = vor.u32 %v119, %v120
    %v122 = vsub.s32 4294967266, %v117
    %v123 = vadd.s32 %v122, 127
    %v124 = vshll.u32 %v123, 23
    %v125 = vor.u32 4788187, %v124
    %v126 = vand.u32 2147483647, %v125
    %v128 = vcvt.s32.f32 %v121
    %v129 = vmul.f32 %v128, %v126
    %v130 = vxor.u32 %v129, 2147483648
    %v131 = vsel %vm48, %v130, %v129
    %v132 = vsub.s32 4, %v108
    %v133 = vsel %vm48, %v132, %v108
    %v134 = vsel %vm47, %v45, %v131
    %v135 = vsel %vm47, 0, %v133
    %v136 = vcosq.f32.pop %v134
    %v137 = vsinq.f32.pop %v134
    %vm138 = vweird.f32 %v45
    %v139 = vadd.s32 %v135, 3
    %v140 = vand.u32 %v139, 3
    %vm141 = vcmp.lt.s32.totalorder %v140, 2
    %vm142 = vcmp.eq.s32.totalorder %v140, 0
    %v143 = vxor.u32 %v137, 2147483648
    %v144 = vsel %vm142, %v136, %v143
    %vm145 = vcmp.eq.s32.totalorder %v140, 2
    %v146 = vxor.u32 %v136, 2147483648
    %v147 = vsel %vm145, %v146, %v137
    %v148 = vsel %vm141, %v144, %v147
    %v149 = vsel %vm138, nan, %v148
    %v150 = vmul.f32 %v149, 0.25
    %vm151 = vcmask 261120
    %152 = vst.msk [vmem:[#allocation5] sm:$0xff] %vm151, %v150
    // Predicated region
    $region14: #{tpu_custom_call.1} parent=1 // pred_check
      _
    $region15: #{tpu_custom_call.1} parent=1 // pred_check_branch
      %154 = sbr.rel (0) target = $region17
    $region16: #{tpu_custom_call.1} parent=1 // pred_region
      %s156 = ssub.s32 128, 128
      %157 = vsyncadd [#allocation4], %s156
      %s159 = sshll.u32 [#allocation5], 4
      %s160 = int_to_ptr.vmem [resolvable:$true] %s159
      %162 = dma.vmem_to_hbm [thread:$0]  %s160, 128, %s2, [#allocation4]
    $region17: #{tpu_custom_call.1} parent=1 // pred_fallthru
      _
    // Predicated region
    $region18: #{tpu_custom_call.1} parent=1 // pred_check
      _
    $region19: #{tpu_custom_call.1} parent=1 // pred_check_branch
      %164 = sbr.rel (0) target = $region21
    $region20: #{tpu_custom_call.1} parent=1 // pred_region
      %165 = dma.done [#allocation4], 128
    $region21: #{tpu_custom_call.1} parent=1 // pred_fallthru
      _
    %166 = vsyncpa [#allocation3], 1
    %167 = vsyncpa [#allocation4], 1

</llo_original>
